<compile_context>
chip_gen: v7x
topology: tpu7x:2x2x1
jax: 0.10.0
libtpu: 0.0.40
codegen_flags: <defaults>
</compile_context>

<pallas_src>
import jax
import jax.numpy as jnp
import numpy as np
from jax.experimental import pallas as pl
from jax.experimental.pallas import tpu as pltpu


def _choose_packing(H, W):
    """Pick R (dividing H): pack R original W-rows side-by-side along lanes.

    Prefer R*W an exact multiple of 128 (unmasked lane-dense stores), then the
    highest lane occupancy, then the smallest Wp (keeps more rows per block).
    """
    best_r, best_key = 1, None
    for r in range(1, H + 1):
        if H % r:
            continue
        wp = r * W
        if wp > 1024:              # keep the lane extent reasonable
            continue
        pad = (-wp) % 128
        key = (pad == 0, wp / (wp + pad), -wp)
        if best_key is None or key > best_key:
            best_key, best_r = key, r
    return best_r


def _pick_budgets():
    """(per-array block byte budget, vmem_limit_bytes), generation aware."""
    try:
        kind = jax.devices()[0].device_kind.lower()
    except Exception:
        kind = ""
    if "v5" in kind or "v6" in kind:
        # 128 MiB physical VMEM: ~4 MiB blocks, raise the scoped limit to 64 MiB.
        return 4 << 20, 64 * 1024 * 1024
    # v7x (64 MiB physical VMEM) / unknown backends: ~2 MiB blocks, 32 MiB limit.
    return 2 << 20, 32 * 1024 * 1024


def _choose_planes_per_block(nc, rows_per_plane, wp, in_itemsize, cmp_itemsize,
                             block_byte_budget):
    """How many whole (H, W) planes each grid step processes."""
    sub_align = {4: 8, 2: 16, 1: 32}.get(in_itemsize, 8)
    # Size the block by the larger of the HBM-transfer footprint (input dtype)
    # and the in-kernel working footprint (compute dtype) so low-precision
    # inputs still move ~block_byte_budget useful HBM bytes per grid step.
    bytes_per_row = wp * max(in_itemsize, cmp_itemsize)
    budget_rows = max(1, block_byte_budget // bytes_per_row)
    divisors = [b for b in range(1, nc + 1) if nc % b == 0]
    aligned = [b for b in divisors
               if (b * rows_per_plane) % sub_align == 0 or b == nc]
    fitting = [b for b in aligned if b * rows_per_plane <= budget_rows]
    if not fitting:
        # Even one plane exceeds the budget; take the smallest legal block.
        # TODO(synk): intra-plane halo tiling for extremely large H*W planes.
        return aligned[0]
    # Prefer the largest block that still leaves >=4 grid steps (>=2 per v7x
    # TensorCore so the BlockSpec double-buffer can overlap DMA with compute),
    # then >=2, then anything.
    for min_steps in (4, 2, 1):
        cand = [b for b in fitting if nc // b >= min_steps]
        if cand:
            return max(cand)
    return max(fitting)


def _make_masks(W, R, rows_per_plane, Wp, Brows):
    """Host-side boundary masks (static shapes) passed as tiny kernel operands."""
    lane = np.arange(Wp)
    w_in = lane % W
    lane_m = np.stack([
        w_in > 0,              # has_left   (w > 0)
        w_in < W - 1,          # has_right  (w < W-1)
        lane < W,              # q_first    (h % R == 0)
        lane >= Wp - W,        # q_last     (h % R == R-1)
    ]).astype(np.float32)                                    # (4, Wp)
    t = np.arange(Brows) % rows_per_plane
    row_m = np.stack([t == 0, t == rows_per_plane - 1],
                     axis=1).astype(np.float32)              # (Brows, 2)
    return jnp.asarray(lane_m), jnp.asarray(row_m)


def _make_bilm_kernel(W, R, rows_per_plane, Wp, compute_dtype):
    def kernel(x_ref, lane_ref, row_ref, o_ref):
        x = x_ref[...]                                       # (Brows, Wp) packed
        # sigmoid in f32 for accuracy; pooling/multiply in compute_dtype
        # (bf16 inputs stay bf16: packed vregs, 2x VPU throughput on v6e/v7x).
        s = jax.nn.sigmoid(x.astype(jnp.float32)).astype(compute_dtype)

        lm = lane_ref[...]                                   # (4, Wp) f32 0/1
        has_left = lm[0:1, :] != 0.0
        has_right = lm[1:2, :] != 0.0
        q_first = lm[2:3, :] != 0.0
        q_last = lm[3:4, :] != 0.0
        rm = row_ref[...]                                    # (Brows, 2) f32 0/1
        t_first = rm[:, 0:1] != 0.0
        t_last = rm[:, 1:2] != 0.0

        # ---- vertical pass first: neighbour VALUES shared by max & min ----
        # Out-of-bounds neighbours are replaced by the centre value s, which is
        # neutral for both reductions -> no +/-inf constants, selects shared.
        if R > 1:
            dn = jnp.roll(s, -W, axis=1)          # value at h+1 (same packed row)
            up = jnp.roll(s, W, axis=1)           # value at h-1 (same packed row)
            if rows_per_plane > 1:
                # q==R-1 / q==0 lanes take their vertical neighbour from the
                # next / previous packed row; h==H-1 / h==0 fall back to s.
                dn = jnp.where(q_last,
                               jnp.where(t_last, s, jnp.roll(dn, -1, axis=0)),
                               dn)
                up = jnp.where(q_first,
                               jnp.where(t_first, s, jnp.roll(up, 1, axis=0)),
                               up)
            else:                                 # whole plane in one packed row
                dn = jnp.where(q_last, s, dn)
                up = jnp.where(q_first, s, up)
        elif rows_per_plane > 1:                  # no lane packing: sublane shifts
            dn = jnp.where(t_last, s, jnp.roll(s, -1, axis=0))
            up = jnp.where(t_first, s, jnp.roll(s, 1, axis=0))
        else:                                     # H == 1: no vertical neighbours
            dn = s
            up = s
        vmax = jnp.maximum(s, jnp.maximum(dn, up))
        vmin = jnp.minimum(s, jnp.minimum(dn, up))

        # ---- horizontal pass on the two running results (self-value fill) ----
        def hpass(a, combine):
            if W == 1:
                return a
            left = jnp.roll(a, 1, axis=1)         # value at w-1
            right = jnp.roll(a, -1, axis=1)       # value at w+1
            nbr = combine(jnp.where(has_left, left, a),
                          jnp.where(has_right, right, a))
            return combine(a, nbr)

        pmax = hpass(vmax, jnp.maximum)
        pmin = hpass(vmin, jnp.minimum)

        # maxpool(sigmoid) + maxpool(-sigmoid) == pmax - pmin
        o_ref[...] = (x.astype(compute_dtype) * (pmax - pmin)).astype(o_ref.dtype)

    return kernel


def bilm(feat):
    """feat: (N, C, H, W). Returns same shape/dtype as feat."""
    N, C, H, W = feat.shape
    nc = N * C
    R = _choose_packing(H, W)
    rows_per_plane = H // R
    Wp = R * W
    rtot = nc * rows_per_plane

    compute_dtype = jnp.bfloat16 if feat.dtype == jnp.bfloat16 else jnp.float32
    block_budget, vmem_limit = _pick_budgets()
    Bp = _choose_planes_per_block(nc, rows_per_plane, Wp, feat.dtype.itemsize,
                                  jnp.dtype(compute_dtype).itemsize, block_budget)
    Brows = Bp * rows_per_plane
    grid = (nc // Bp,)

    # Pure row-major reshape: (n,c,h,w) -> row g = plane*rows_per_plane + h//R,
    # lane l = (h % R)*W + w.  No transpose, no extra HBM traffic.
    x2 = feat.reshape(rtot, Wp)
    lane_m, row_m = _make_masks(W, R, rows_per_plane, Wp, Brows)

    kernel = _make_bilm_kernel(W, R, rows_per_plane, Wp, compute_dtype)
    out = pl.pallas_call(
        kernel,
        out_shape=jax.ShapeDtypeStruct((rtot, Wp), feat.dtype),
        grid=grid,
        in_specs=[
            pl.BlockSpec((Brows, Wp), lambda i: (i, 0)),   # feature block
            pl.BlockSpec((4, Wp), lambda i: (0, 0)),       # lane masks (resident)
            pl.BlockSpec((Brows, 2), lambda i: (0, 0)),    # row masks (resident)
        ],
        out_specs=pl.BlockSpec((Brows, Wp), lambda i: (i, 0)),
        input_output_aliases={0: 0},   # donate the packed input buffer
        compiler_params=pltpu.CompilerParams(
            dimension_semantics=("parallel",),
            vmem_limit_bytes=vmem_limit,
        ),
    )(x2, lane_m, row_m)
    return out.reshape(N, C, H, W)


def bilm_reference(feat):
    """Pure-JAX reference mirroring the PyTorch module."""
    pos = jax.nn.sigmoid(feat)
    init = jnp.asarray(-jnp.inf, feat.dtype)

    def mp(x):
        return jax.lax.reduce_window(
            x, init, jax.lax.max,
            window_dimensions=(1, 1, 3, 3),
            window_strides=(1, 1, 1, 1),
            padding=((0, 0), (0, 0), (1, 1), (1, 1)),
        )

    return feat * (mp(pos) + mp(-pos))


if __name__ == "__main__":
    key = jax.random.PRNGKey(0)
    ks = jax.random.split(key, 5)

    def check(feat, atol, rtol, tag):
        out = jax.block_until_ready(bilm(feat))
        ref = bilm_reference(feat)
        assert out.shape == feat.shape and out.dtype == feat.dtype, tag
        assert jnp.allclose(out, ref, atol=atol, rtol=rtol), f"mismatch: {tag}"

    # Primary case: small feature maps -> lane-packed path (R=8, Wp=128, 2 steps).
    check(jax.random.normal(ks[0], (2, 4, 16, 16), jnp.float32), 2e-5, 2e-5, "packed f32")
    # W == 128 -> unpacked path (pure sublane vertical shifts).
    check(jax.random.normal(ks[1], (1, 2, 8, 128), jnp.float32), 2e-5, 2e-5, "unpacked f32")
    # W not a multiple of 128, 1 < R, single-grid-step fallback.
    check(jax.random.normal(ks[2], (1, 3, 12, 24), jnp.float32), 2e-5, 2e-5, "ragged W")
    # bf16 input -> bf16 pooling path.
    check(jax.random.normal(ks[3], (2, 4, 16, 16)).astype(jnp.bfloat16), 5e-2, 5e-2, "bf16")
    # H == 1 -> horizontal-only path.
    check(jax.random.normal(ks[4], (1, 2, 1, 64), jnp.float32), 2e-5, 2e-5, "H=1")

    print("KERNEL_OK")
</pallas_src>

<mosaic_0001>
module attributes {stable_mosaic.version = 11 : i64} {
  func.func @kernel(%arg0: i32, %arg1: memref<8x128xf32, #tpu.memory_space<vmem>>, %arg2: memref<4x128xf32, #tpu.memory_space<vmem>>, %arg3: memref<8x2xf32, #tpu.memory_space<vmem>>, %arg4: memref<8x128xf32, #tpu.memory_space<vmem>>) attributes {dimension_semantics = [#tpu.dimension_semantics<parallel>], iteration_bounds = array<i64: 2>, scalar_prefetch = 0 : i64, scratch_operands = 0 : i64, tpu.core_type = #tpu.core_type<tc>, window_params = [{transform_indices = @transform_0, window_bounds = array<i64: 8, 128>}, {pipeline_mode = #tpu.pipeline_mode<synchronous>, transform_indices = @transform_1, window_bounds = array<i64: 4, 128>}, {pipeline_mode = #tpu.pipeline_mode<synchronous>, transform_indices = @transform_2, window_bounds = array<i64: 8, 2>}, {transform_indices = @transform_3, window_bounds = array<i64: 8, 128>}]} {
    %c0 = arith.constant 0 : index
    %c0_0 = arith.constant 0 : index
    %0 = vector.load %arg1[%c0, %c0_0] : memref<8x128xf32, #tpu.memory_space<vmem>>, vector<8x128xf32>
    %1 = arith.negf %0 : vector<8x128xf32>
    %2 = math.exp %1 : vector<8x128xf32>
    %cst = arith.constant 1.000000e+00 : f32
    %3 = vector.broadcast %cst : f32 to vector<8x128xf32>
    %4 = arith.addf %3, %2 : vector<8x128xf32>
    %5 = arith.divf %3, %4 : vector<8x128xf32>
    %c0_1 = arith.constant 0 : index
    %c0_2 = arith.constant 0 : index
    %6 = vector.load %arg2[%c0_1, %c0_2] : memref<4x128xf32, #tpu.memory_space<vmem>>, vector<4x128xf32>
    %7 = vector.extract_strided_slice %6 {offsets = [0, 0], sizes = [1, 128], strides = [1, 1]} : vector<4x128xf32> to vector<1x128xf32>
    %cst_3 = arith.constant 0.000000e+00 : f32
    %8 = vector.broadcast %cst_3 : f32 to vector<1x128xf32>
    %9 = arith.cmpf one, %7, %8 : vector<1x128xf32>
    %10 = vector.extract_strided_slice %6 {offsets = [1, 0], sizes = [1, 128], strides = [1, 1]} : vector<4x128xf32> to vector<1x128xf32>
    %cst_4 = arith.constant 0.000000e+00 : f32
    %11 = vector.broadcast %cst_4 : f32 to vector<1x128xf32>
    %12 = arith.cmpf one, %10, %11 : vector<1x128xf32>
    %13 = vector.extract_strided_slice %6 {offsets = [2, 0], sizes = [1, 128], strides = [1, 1]} : vector<4x128xf32> to vector<1x128xf32>
    %cst_5 = arith.constant 0.000000e+00 : f32
    %14 = vector.broadcast %cst_5 : f32 to vector<1x128xf32>
    %15 = arith.cmpf one, %13, %14 : vector<1x128xf32>
    %16 = vector.extract_strided_slice %6 {offsets = [3, 0], sizes = [1, 128], strides = [1, 1]} : vector<4x128xf32> to vector<1x128xf32>
    %cst_6 = arith.constant 0.000000e+00 : f32
    %17 = vector.broadcast %cst_6 : f32 to vector<1x128xf32>
    %18 = arith.cmpf one, %16, %17 : vector<1x128xf32>
    %c0_7 = arith.constant 0 : index
    %c0_8 = arith.constant 0 : index
    %19 = vector.load %arg3[%c0_7, %c0_8] : memref<8x2xf32, #tpu.memory_space<vmem>>, vector<8x2xf32>
    %20 = vector.extract_strided_slice %19 {offsets = [0, 0], sizes = [8, 1], strides = [1, 1]} : vector<8x2xf32> to vector<8x1xf32>
    %cst_9 = arith.constant 0.000000e+00 : f32
    %21 = vector.broadcast %cst_9 : f32 to vector<8x1xf32>
    %22 = arith.cmpf one, %20, %21 : vector<8x1xf32>
    %23 = vector.extract_strided_slice %19 {offsets = [0, 1], sizes = [8, 1], strides = [1, 1]} : vector<8x2xf32> to vector<8x1xf32>
    %cst_10 = arith.constant 0.000000e+00 : f32
    %24 = vector.broadcast %cst_10 : f32 to vector<8x1xf32>
    %25 = arith.cmpf one, %23, %24 : vector<8x1xf32>
    %26 = vector.extract_strided_slice %5 {offsets = [0, 16], sizes = [8, 112], strides = [1, 1]} : vector<8x128xf32> to vector<8x112xf32>
    %27 = vector.extract_strided_slice %5 {offsets = [0, 0], sizes = [8, 16], strides = [1, 1]} : vector<8x128xf32> to vector<8x16xf32>
    %28 = tpu.concatenate %26, %27 in 1 : vector<8x112xf32>, vector<8x16xf32> -> vector<8x128xf32>
    %29 = vector.extract_strided_slice %5 {offsets = [0, 112], sizes = [8, 16], strides = [1, 1]} : vector<8x128xf32> to vector<8x16xf32>
    %30 = vector.extract_strided_slice %5 {offsets = [0, 0], sizes = [8, 112], strides = [1, 1]} : vector<8x128xf32> to vector<8x112xf32>
    %31 = tpu.concatenate %29, %30 in 1 : vector<8x16xf32>, vector<8x112xf32> -> vector<8x128xf32>
    %32 = vector.extract_strided_slice %28 {offsets = [1, 0], sizes = [7, 128], strides = [1, 1]} : vector<8x128xf32> to vector<7x128xf32>
    %33 = vector.extract_strided_slice %28 {offsets = [0, 0], sizes = [1, 128], strides = [1, 1]} : vector<8x128xf32> to vector<1x128xf32>
    %34 = tpu.concatenate %32, %33 in 0 : vector<7x128xf32>, vector<1x128xf32> -> vector<8x128xf32>
    %35 = vector.shape_cast %25 : vector<8x1xi1> to vector<8x1xi1>
    %36 = vector.broadcast %35 : vector<8x1xi1> to vector<8x128xi1>
    %37 = arith.select %36, %5, %34 : vector<8x128xi1>, vector<8x128xf32>
    %38 = vector.shape_cast %18 : vector<1x128xi1> to vector<1x128xi1>
    %39 = vector.broadcast %38 : vector<1x128xi1> to vector<8x128xi1>
    %40 = arith.select %39, %37, %28 : vector<8x128xi1>, vector<8x128xf32>
    %41 = vector.extract_strided_slice %31 {offsets = [7, 0], sizes = [1, 128], strides = [1, 1]} : vector<8x128xf32> to vector<1x128xf32>
    %42 = vector.extract_strided_slice %31 {offsets = [0, 0], sizes = [7, 128], strides = [1, 1]} : vector<8x128xf32> to vector<7x128xf32>
    %43 = tpu.concatenate %41, %42 in 0 : vector<1x128xf32>, vector<7x128xf32> -> vector<8x128xf32>
    %44 = vector.shape_cast %22 : vector<8x1xi1> to vector<8x1xi1>
    %45 = vector.broadcast %44 : vector<8x1xi1> to vector<8x128xi1>
    %46 = arith.select %45, %5, %43 : vector<8x128xi1>, vector<8x128xf32>
    %47 = vector.shape_cast %15 : vector<1x128xi1> to vector<1x128xi1>
    %48 = vector.broadcast %47 : vector<1x128xi1> to vector<8x128xi1>
    %49 = arith.select %48, %46, %31 : vector<8x128xi1>, vector<8x128xf32>
    %50 = arith.maximumf %40, %49 : vector<8x128xf32>
    %51 = arith.maximumf %5, %50 : vector<8x128xf32>
    %52 = arith.minimumf %40, %49 : vector<8x128xf32>
    %53 = arith.minimumf %5, %52 : vector<8x128xf32>
    %54 = vector.extract_strided_slice %51 {offsets = [0, 127], sizes = [8, 1], strides = [1, 1]} : vector<8x128xf32> to vector<8x1xf32>
    %55 = vector.extract_strided_slice %51 {offsets = [0, 0], sizes = [8, 127], strides = [1, 1]} : vector<8x128xf32> to vector<8x127xf32>
    %56 = tpu.concatenate %54, %55 in 1 : vector<8x1xf32>, vector<8x127xf32> -> vector<8x128xf32>
    %57 = vector.extract_strided_slice %51 {offsets = [0, 1], sizes = [8, 127], strides = [1, 1]} : vector<8x128xf32> to vector<8x127xf32>
    %58 = vector.extract_strided_slice %51 {offsets = [0, 0], sizes = [8, 1], strides = [1, 1]} : vector<8x128xf32> to vector<8x1xf32>
    %59 = tpu.concatenate %57, %58 in 1 : vector<8x127xf32>, vector<8x1xf32> -> vector<8x128xf32>
    %60 = vector.shape_cast %9 : vector<1x128xi1> to vector<1x128xi1>
    %61 = vector.broadcast %60 : vector<1x128xi1> to vector<8x128xi1>
    %62 = arith.select %61, %56, %51 : vector<8x128xi1>, vector<8x128xf32>
    %63 = vector.shape_cast %12 : vector<1x128xi1> to vector<1x128xi1>
    %64 = vector.broadcast %63 : vector<1x128xi1> to vector<8x128xi1>
    %65 = arith.select %64, %59, %51 : vector<8x128xi1>, vector<8x128xf32>
    %66 = arith.maximumf %62, %65 : vector<8x128xf32>
    %67 = arith.maximumf %51, %66 : vector<8x128xf32>
    %68 = vector.extract_strided_slice %53 {offsets = [0, 127], sizes = [8, 1], strides = [1, 1]} : vector<8x128xf32> to vector<8x1xf32>
    %69 = vector.extract_strided_slice %53 {offsets = [0, 0], sizes = [8, 127], strides = [1, 1]} : vector<8x128xf32> to vector<8x127xf32>
    %70 = tpu.concatenate %68, %69 in 1 : vector<8x1xf32>, vector<8x127xf32> -> vector<8x128xf32>
    %71 = vector.extract_strided_slice %53 {offsets = [0, 1], sizes = [8, 127], strides = [1, 1]} : vector<8x128xf32> to vector<8x127xf32>
    %72 = vector.extract_strided_slice %53 {offsets = [0, 0], sizes = [8, 1], strides = [1, 1]} : vector<8x128xf32> to vector<8x1xf32>
    %73 = tpu.concatenate %71, %72 in 1 : vector<8x127xf32>, vector<8x1xf32> -> vector<8x128xf32>
    %74 = vector.shape_cast %9 : vector<1x128xi1> to vector<1x128xi1>
    %75 = vector.broadcast %74 : vector<1x128xi1> to vector<8x128xi1>
    %76 = arith.select %75, %70, %53 : vector<8x128xi1>, vector<8x128xf32>
    %77 = vector.shape_cast %12 : vector<1x128xi1> to vector<1x128xi1>
    %78 = vector.broadcast %77 : vector<1x128xi1> to vector<8x128xi1>
    %79 = arith.select %78, %73, %53 : vector<8x128xi1>, vector<8x128xf32>
    %80 = arith.minimumf %76, %79 : vector<8x128xf32>
    %81 = arith.minimumf %53, %80 : vector<8x128xf32>
    %82 = arith.subf %67, %81 : vector<8x128xf32>
    %83 = arith.mulf %0, %82 : vector<8x128xf32>
    %c0_11 = arith.constant 0 : index
    %c0_12 = arith.constant 0 : index
    %84 = vector.load %arg4[%c0_11, %c0_12] : memref<8x128xf32, #tpu.memory_space<vmem>>, vector<8x128xf32>
    tpu.vector_store %arg4[%c0_11, %c0_12], %83 {strides = array<i32>} : memref<8x128xf32, #tpu.memory_space<vmem>>, vector<8x128xf32>,
    return
  }
  func.func @transform_0(%arg0: i32) -> (i32, i32) {
    %c0_i32 = arith.constant 0 : i32
    %c0_i32_0 = arith.constant 0 : i32
    return %arg0, %c0_i32 : i32, i32
  }
  func.func @transform_1(%arg0: i32) -> (i32, i32) {
    %c0_i32 = arith.constant 0 : i32
    %c0_i32_0 = arith.constant 0 : i32
    %c0_i32_1 = arith.constant 0 : i32
    return %c0_i32, %c0_i32_0 : i32, i32
  }
  func.func @transform_2(%arg0: i32) -> (i32, i32) {
    %c0_i32 = arith.constant 0 : i32
    %c0_i32_0 = arith.constant 0 : i32
    %c0_i32_1 = arith.constant 0 : i32
    return %c0_i32, %c0_i32_0 : i32, i32
  }
  func.func @transform_3(%arg0: i32) -> (i32, i32) {
    %c0_i32 = arith.constant 0 : i32
    %c0_i32_0 = arith.constant 0 : i32
    return %arg0, %c0_i32 : i32, i32
  }
}

</mosaic_0001>

<llo_original>
// kernel: tpu_custom_call.1
$region0: #{tpu_custom_call.1}
  #allocation0 [shape = 'u32[]', space=smem, size = 0x4, offset = 0x4, fixed_abs, tag = 'smem constant byte address 0x4 - core index']
  #allocation1 [shape = 'u32[144,128]{1,0:T(1,128)}', space=vmem, size = 0x12000, scoped, tag = 'internal scratch']
  %s0 = inlined_call_operand.hbm [shape: f32[16,128], index: 0, kind: input, shape index: {}, may-alias: {0,3}]
  %s1 = inlined_call_operand.vmem [shape: f32[4,128], index: 1, kind: input, shape index: {}]
  %s2 = inlined_call_operand.vmem [shape: f32[8,2], index: 2, kind: input, shape index: {}]
  %s3 = inlined_call_operand.hbm [shape: f32[16,128], index: 3, kind: output, shape index: {}, may-alias: {0,3}]
  %s4 = sld [smem:[#allocation0]]
  $region49: #{tpu_custom_call.1} parent=0
    _
  %s6 = ssub.s32 1, %s4
  %s7 = scalar_select 0, %s6, %s4
  $region1: #{tpu_custom_call.1} parent=0
    #allocation2 [shape = 'u8[8192]{0}', space=vmem, size = 0x2000, scoped, tag = 'input window, operand 0']
    #allocation3 [shape = 's32[2]{0}', space=sflag, size = 0x8, scoped, tag = 'scoped memory for tpu_custom_call.1']
    #allocation4 [shape = 's32[2]{0}', space=sflag, size = 0x8, scoped, tag = 'scoped memory for tpu_custom_call.1']
    #allocation5 [shape = 'u8[8192]{0}', space=vmem, size = 0x2000, scoped, tag = 'output window, operand 0']
    %8 = vsyncpa [#allocation3], 0
    %s9 = scalar_lea.sflag [#allocation3], 1
    %10 = vsyncpa %s9, 0
    %11 = vsyncpa [#allocation4], 0
    %s12 = scalar_lea.sflag [#allocation4], 1
    %13 = vsyncpa %s12, 0
    loop: start=0, step=1, limit=4
    $region2: #{tpu_custom_call.1} parent=1 // loop_pre_header
      _
    $region3: #{tpu_custom_call.1} parent=1 // loop_header
      %s15 = sphi 0, %s19
      %p16 = scmp.ge.s32.totalorder %s15, 4
      %s25 = sphi 0, %s27
      %s28 = sphi 0, %s25
      %s29 = sphi 0, %s28
      %s45 = sphi 0, %s29
      %s49 = sphi 0, %s49
      %s51 = sphi 0, %s49
      %s52 = sphi 0, %s51
      %s66 = sphi 0, %s52
      %s70 = sphi 0, %s70
      %s72 = sphi 0, %s70
      %s73 = sphi 0, %s72
      %s87 = sphi 0, %s73
      %s93 = sphi 0, %s95
      %s96 = sphi 0, %s93
      %s97 = sphi 0, %s96
      %s113 = sphi 0, %s97
    $region4: #{tpu_custom_call.1} parent=1 // loop_header_branch
      %18 = sbr.rel (%p16) target = $region8
    $region5: #{tpu_custom_call.1} parent=1 // loop_body
      %s20 = ssub.s32 %s15, 1
      %s21 = ssub.s32 %s15, 2
      %s22 = sadd.s32 %s15, 1
      %s23 = ssub.s32 %s15, %s22
      %p24 = scmp.eq.s32.totalorder %s23, 0
      %s26 = sadd.s32 %s25, 1
      %s27 = scalar_select %p24, %s25, %s26
      %p30 = pneg %p24
      %p31 = scmp.eq.s32.totalorder %s15, 1
      %p32 = por %p30, %p31
      %p33 = scmp.ne.s32.totalorder %s25, %s28
      %p34 = scmp.eq.s32.totalorder %s15, 0
      %p35 = por %p33, %p34
      %p36 = scmp.ne.s32.totalorder %s25, %s28
      %p37 = scmp.eq.s32.totalorder %s20, 1
      %p38 = por %p36, %p37
      %p39 = scmp.ne.s32.totalorder %s28, %s29
      %p40 = scmp.eq.s32.totalorder %s20, 0
      %p41 = por %p39, %p40
      %p42 = scmp.ne.s32.totalorder %s28, %s29
      %p43 = scmp.eq.s32.totalorder %s21, 1
      %p44 = por %p42, %p43
      %p46 = scmp.ne.s32.totalorder %s29, %s45
      %p47 = scmp.eq.s32.totalorder %s21, 0
      %p48 = por %p46, %p47
      %s50 = sadd.s32 %s49, 1
      %p53 = scmp.eq.s32.totalorder %s15, 1
      %p54 = scmp.ne.s32.totalorder %s49, %s51
      %p55 = scmp.eq.s32.totalorder %s15, 0
      %p56 = por %p54, %p55
      %p57 = scmp.ne.s32.totalorder %s49, %s51
      %p58 = scmp.eq.s32.totalorder %s20, 1
      %p59 = por %p57, %p58
      %p60 = scmp.ne.s32.totalorder %s51, %s52
      %p61 = scmp.eq.s32.totalorder %s20, 0
      %p62 = por %p60, %p61
      %p63 = scmp.ne.s32.totalorder %s51, %s52
      %p64 = scmp.eq.s32.totalorder %s21, 1
      %p65 = por %p63, %p64
      %p67 = scmp.ne.s32.totalorder %s52, %s66
      %p68 = scmp.eq.s32.totalorder %s21, 0
      %p69 = por %p67, %p68
      %s71 = sadd.s32 %s70, 1
      %p74 = scmp.eq.s32.totalorder %s15, 1
      %p75 = scmp.ne.s32.totalorder %s70, %s72
      %p76 = scmp.eq.s32.totalorder %s15, 0
      %p77 = por %p75, %p76
      %p78 = scmp.ne.s32.totalorder %s70, %s72
      %p79 = scmp.eq.s32.totalorder %s20, 1
      %p80 = por %p78, %p79
      %p81 = scmp.ne.s32.totalorder %s72, %s73
      %p82 = scmp.eq.s32.totalorder %s20, 0
      %p83 = por %p81, %p82
      %p84 = scmp.ne.s32.totalorder %s72, %s73
      %p85 = scmp.eq.s32.totalorder %s21, 1
      %p86 = por %p84, %p85
      %p88 = scmp.ne.s32.totalorder %s73, %s87
      %p89 = scmp.eq.s32.totalorder %s21, 0
      %p90 = por %p88, %p89
      %s91 = ssub.s32 %s15, %s22
      %p92 = scmp.eq.s32.totalorder %s91, 0
      %s94 = sadd.s32 %s93, 1
      %s95 = scalar_select %p92, %s93, %s94
      %p98 = pneg %p92
      %p99 = scmp.eq.s32.totalorder %s15, 1
      %p100 = por %p98, %p99
      %p101 = scmp.ne.s32.totalorder %s93, %s96
      %p102 = scmp.eq.s32.totalorder %s15, 0
      %p103 = por %p101, %p102
      %p104 = scmp.ne.s32.totalorder %s93, %s96
      %p105 = scmp.eq.s32.totalorder %s20, 1
      %p106 = por %p104, %p105
      %p107 = scmp.ne.s32.totalorder %s96, %s97
      %p108 = scmp.eq.s32.totalorder %s20, 0
      %p109 = por %p107, %p108
      %p110 = scmp.ne.s32.totalorder %s96, %s97
      %p111 = scmp.eq.s32.totalorder %s21, 1
      %p112 = por %p110, %p111
      %p114 = scmp.ne.s32.totalorder %s97, %s113
      %p115 = scmp.eq.s32.totalorder %s21, 0
      %p116 = por %p114, %p115
      %p117 = scmp.le.s32.totalorder 1, %s15
      %p118 = scmp.lt.s32.totalorder %s15, 3
      %p119 = pnand %p117, %p118
      %p120 = pneg %p119
      // Predicated region
      $region9: #{tpu_custom_call.1} parent=5 // pred_check
        _
      $region10: #{tpu_custom_call.1} parent=5 // pred_check_branch
        %122 = sbr.rel (%p119) target = $region12
      $region11: #{tpu_custom_call.1} parent=5 // pred_region
        %s123 = ssub.s32 %s15, 1
        // Predicated region
        $region13: #{tpu_custom_call.1} parent=11 // pred_check
          %p124 = pneg %p62
        $region14: #{tpu_custom_call.1} parent=11 // pred_check_branch
          %126 = sbr.rel (%p124) target = $region16
        $region15: #{tpu_custom_call.1} parent=11 // pred_region
          _
        $region16: #{tpu_custom_call.1} parent=11 // pred_fallthru
          _
        // Predicated region
        $region17: #{tpu_custom_call.1} parent=11 // pred_check
          %p127 = pneg %p83
        $region18: #{tpu_custom_call.1} parent=11 // pred_check_branch
          %129 = sbr.rel (%p127) target = $region20
        $region19: #{tpu_custom_call.1} parent=11 // pred_region
          _
        $region20: #{tpu_custom_call.1} parent=11 // pred_fallthru
          _
      $region12: #{tpu_custom_call.1} parent=5 // pred_fallthru
        _
      %p130 = scmp.lt.s32.totalorder %s15, 2
      // Predicated region
      $region21: #{tpu_custom_call.1} parent=5 // pred_check
        %p131 = pneg %p130
      $region22: #{tpu_custom_call.1} parent=5 // pred_check_branch
        %133 = sbr.rel (%p131) target = $region24
      $region23: #{tpu_custom_call.1} parent=5 // pred_region
        // Predicated region
        $region25: #{tpu_custom_call.1} parent=23 // pred_check
          %p134 = pneg %p35
        $region26: #{tpu_custom_call.1} parent=23 // pred_check_branch
          %136 = sbr.rel (%p134) target = $region28
        $region27: #{tpu_custom_call.1} parent=23 // pred_region
          %s137 = sand.u32 %s25, 1
          %s138 = scalar_lea.sflag [#allocation3], %s137
          %s139 = sand.u32 %s25, 1
          %s140 = smul.addr %s139, 8
          %s141 = scalar_lea.vmem [#allocation2], %s140
          %s143 = ssub.s32 128, 128
          %144 = vsyncadd %s138, %s143
          %s145 = smul.addr %s15, 128
          %s146 = scalar_lea.hbm %s0, %s145
          %s148 = sshll.u32 %s141, 4
          %s149 = int_to_ptr.vmem [resolvable:$true] %s148
          %151 = dma.hbm_to_vmem [thread:$0]  %s146, 128, %s149, %s138
        $region28: #{tpu_custom_call.1} parent=23 // pred_fallthru
          _
      $region24: #{tpu_custom_call.1} parent=5 // pred_fallthru
        _
      %p152 = scmp.le.s32.totalorder 1, %s15
      %p153 = scmp.lt.s32.totalorder %s15, 3
      %p154 = pnand %p152, %p153
      %p155 = pneg %p154
      // Predicated region
      $region29: #{tpu_custom_call.1} parent=5 // pred_check
        _
      $region30: #{tpu_custom_call.1} parent=5 // pred_check_branch
        %157 = sbr.rel (%p154) target = $region32
      $region31: #{tpu_custom_call.1} parent=5 // pred_region
        %s158 = ssub.s32 %s15, 1
        %s159 = sand.u32 %s28, 1
        %s160 = scalar_lea.sflag [#allocation3], %s159
        %s161 = sand.u32 %s28, 1
        %s162 = smul.addr %s161, 8
        %s163 = scalar_lea.vmem [#allocation2], %s162
        // Predicated region
        $region33: #{tpu_custom_call.1} parent=31 // pred_check
          %p164 = pneg %p41
        $region34: #{tpu_custom_call.1} parent=31 // pred_check_branch
          %166 = sbr.rel (%p164) target = $region36
        $region35: #{tpu_custom_call.1} parent=31 // pred_region
          %167 = dma.done %s160, 128
        $region36: #{tpu_custom_call.1} parent=31 // pred_fallthru
          _
        %s168 = sand.u32 %s28, 1
        %s169 = scalar_lea.sflag [#allocation3], %s168
        %s170 = sand.u32 %s28, 1
        %s171 = smul.addr %s170, 8
        %s172 = scalar_lea.vmem [#allocation2], %s171
        %p173 = pneg %p41
        %p174 = pneg %p38
        %p175 = pneg %p62
        %p176 = pneg %p59
        %p177 = pneg %p83
        %p178 = pneg %p80
        %p179 = pneg %p109
        %p180 = pneg %p106
        %s181 = sand.u32 %s96, 1
        %s182 = scalar_lea.sflag [#allocation4], %s181
        %s183 = sand.u32 %s96, 1
        %s184 = smul.addr %s183, 8
        %s185 = scalar_lea.vmem [#allocation5], %s184
        %v186 = vld [vmem:[%s163] sm:$0xff]
        %v187 = vxor.u32 %v186, 2147483648
        %v188 = vmul.f32 %v187, 1.442695
        %v189 = vpow.pop %v188
        %v190 = vadd.f32 %v189, 1.0
        %v191 = vrcp.pop %v190
        %v192 = vmul.f32 1.0, %v191
        %v193 = vld [vmem:[%s1] sm:$0xf]
        %vm194 = vcmp.ne.f32.partialorder %v193, 0.0
        %v195 = vld [vmem:[%s2] sm:$0xff]
        %vm196 = vcmp.ne.f32.partialorder %v195, 0.0
        %198 = vrot.lane.b32.xlu0 %v192, 112
        %v199 = vpop.permute.xlu0 %198
        %201 = vrot.lane.b32.xlu0 %v192, 16
        %v202 = vpop.permute.xlu0 %201
        %v205 = vrot.slane %v199, 1
        %vm207 = vcmask 1046528
        %v208 = vsel %vm207, %v205, %v205
        %v209 = vsel %vm196, 1, 0
        %210 = vset.pattern.permute.xlu0 1
        %211 = vperm.xlu0 %210, %v209
        %v212 = vpop.permute.xlu0 %211
        %vm213 = vcmp.eq.s32.totalorder %v212, 1
        %v214 = vsel %vm213, %v192, %v208
        %v215 = vsel %vm194, 1, 0
        %v216 = vlaneseq
        %v217 = vshrl.u32 %v216, 7
        %v218 = vsub.s32 3, %v217
        %v219 = vrot.slane %v215, %v218
        %vm220 = vcmp.eq.s32.totalorder %v219, 1
        %v221 = vsel %vm220, %v214, %v199
        %v223 = vrot.slane %v202, 7
        %vm225 = vcmask 1040384
        %v226 = vsel %vm225, %v223, %v223
        %227 = vset.pattern.permute.xlu0 0
        %228 = vperm.xlu0 %227, %v209
        %v229 = vpop.permute.xlu0 %228
        %vm230 = vcmp.eq.s32.totalorder %v229, 1
        %v231 = vsel %vm230, %v192, %v226
        %v232 = vlaneseq
        %v233 = vshrl.u32 %v232, 7
        %v234 = vsub.s32 2, %v233
        %v235 = vrot.slane %v215, %v234
        %vm236 = vcmp.eq.s32.totalorder %v235, 1
        %v237 = vsel %vm236, %v231, %v202
        %v238 = vmax.f32 %v221, %v237
        %v239 = vmax.f32 %v192, %v238
        %v240 = vmin.f32 %v221, %v237
        %v241 = vmin.f32 %v192, %v240
        %243 = vrot.lane.b32.xlu0 %v239, 1
        %v244 = vpop.permute.xlu0 %243
        %246 = vrot.lane.b32.xlu0 %v239, 127
        %v247 = vpop.permute.xlu0 %246
        %v249 = vlaneseq
        %v250 = vshrl.u32 %v249, 7
        %v251 = vsub.s32 0, %v250
        %v252 = vrot.slane %v215, %v251
        %vm253 = vcmp.eq.s32.totalorder %v252, 1
        %v254 = vsel %vm253, %v244, %v239
        %v255 = vlaneseq
        %v256 = vshrl.u32 %v255, 7
        %v257 = vsub.s32 1, %v256
        %v258 = vrot.slane %v215, %v257
        %vm259 = vcmp.eq.s32.totalorder %v258, 1
        %v260 = vsel %vm259, %v247, %v239
        %v261 = vmax.f32 %v254, %v260
        %v262 = vmax.f32 %v239, %v261
        %264 = vrot.lane.b32.xlu0 %v241, 1
        %v265 = vpop.permute.xlu0 %264
        %267 = vrot.lane.b32.xlu0 %v241, 127
        %v268 = vpop.permute.xlu0 %267
        %v270 = vsel %vm253, %v265, %v241
        %v271 = vsel %vm259, %v268, %v241
        %v272 = vmin.f32 %v270, %v271
        %v273 = vmin.f32 %v241, %v272
        %v274 = vsub.f32 %v262, %v273
        %v275 = vmul.f32 %v186, %v274
        %276 = vst [vmem:[%s185] sm:$0xff] %v275
        %s277 = sand.u32 %s96, 1
        %s278 = scalar_lea.sflag [#allocation4], %s277
        %s279 = sand.u32 %s96, 1
        %s280 = smul.addr %s279, 8
        %s281 = scalar_lea.vmem [#allocation5], %s280
        // Predicated region
        $region37: #{tpu_custom_call.1} parent=31 // pred_check
          %p282 = pneg %p106
        $region38: #{tpu_custom_call.1} parent=31 // pred_check_branch
          %284 = sbr.rel (%p282) target = $region40
        $region39: #{tpu_custom_call.1} parent=31 // pred_region
          %s286 = ssub.s32 128, 128
          %287 = vsyncadd %s278, %s286
          %s288 = smul.addr %s20, 128
          %s289 = scalar_lea.hbm %s3, %s288
          %s291 = sshll.u32 %s281, 4
          %s292 = int_to_ptr.vmem [resolvable:$true] %s291
          %294 = dma.vmem_to_hbm [thread:$0]  %s292, 128, %s289, %s278
        $region40: #{tpu_custom_call.1} parent=31 // pred_fallthru
          _
      $region32: #{tpu_custom_call.1} parent=5 // pred_fallthru
        _
      %p295 = scmp.le.s32.totalorder 2, %s15
      // Predicated region
      $region41: #{tpu_custom_call.1} parent=5 // pred_check
        %p296 = pneg %p295
      $region42: #{tpu_custom_call.1} parent=5 // pred_check_branch
        %298 = sbr.rel (%p296) target = $region44
      $region43: #{tpu_custom_call.1} parent=5 // pred_region
        %s299 = ssub.s32 %s15, 2
        // Predicated region
        $region45: #{tpu_custom_call.1} parent=43 // pred_check
          %p300 = pneg %p112
        $region46: #{tpu_custom_call.1} parent=43 // pred_check_branch
          %302 = sbr.rel (%p300) target = $region48
        $region47: #{tpu_custom_call.1} parent=43 // pred_region
          %s303 = sand.u32 %s97, 1
          %s304 = scalar_lea.sflag [#allocation4], %s303
          %s305 = sand.u32 %s97, 1
          %s306 = smul.addr %s305, 8
          %s307 = scalar_lea.vmem [#allocation5], %s306
          %308 = dma.done %s304, 128
        $region48: #{tpu_custom_call.1} parent=43 // pred_fallthru
          _
      $region44: #{tpu_custom_call.1} parent=5 // pred_fallthru
        _
    $region6: #{tpu_custom_call.1} parent=1 // loop_footer
      %s19 = sadd.s32 1, %s15
    $region7: #{tpu_custom_call.1} parent=1 // loop_footer_branch
      %14 = sbr.rel target = $region3
    $region8: #{tpu_custom_call.1} parent=1 // loop_exit
      _
    %309 = vsyncpa [#allocation3], 1
    %s310 = scalar_lea.sflag [#allocation3], 1
    %311 = vsyncpa %s310, 1
    %312 = vsyncpa [#allocation4], 1
    %s313 = scalar_lea.sflag [#allocation4], 1
    %314 = vsyncpa %s313, 1

</llo_original>
